<compile_context>
chip_gen: v7x
topology: tpu7x:2x2x1
jax: 0.10.0
libtpu: 0.0.40
codegen_flags: <defaults>
</compile_context>

<pallas_src>
import functools

import jax
import jax.numpy as jnp
from jax import lax
from jax.experimental import pallas as pl
from jax.experimental.pallas import tpu as pltpu


def _edge_weight_and_sum_kernel(ids_ref, e_ref, wrow_ref, b_ref, out_ref, *,
                                num_graphs, elementwise_bf16):
    """One edge-tile step of the weighted-edge segment sum.

    ids_ref  : (1, TE)  int32 graph id per edge in this tile
    e_ref    : (TE, F)  edge features tile (native dtype)
    wrow_ref : (1, F)   Linear weight as a row vector (VMEM)
    b_ref    : (1, 1)   Linear bias (SMEM scalar)
    out_ref  : (G, F)   per-core partial weighted sum, resident across the k axis
    """
    k = pl.program_id(1)

    @pl.when(k == 0)
    def _():
        out_ref[...] = jnp.zeros_like(out_ref)

    e = e_ref[...]                                   # (TE, F) native dtype
    bias = b_ref[0, 0]

    if elementwise_bf16 and e.dtype == jnp.bfloat16:
        # v6e/v7x: bf16-capable VPU/EUP — products in bf16, reductions/tanh in f32.
        wrow = wrow_ref[...].astype(jnp.bfloat16)                    # (1, F)
        logits = jnp.sum((e * wrow).astype(jnp.float32),
                         axis=-1, keepdims=True)                     # (TE, 1) f32
        w = jnp.tanh(logits + bias)                                  # (TE, 1) f32
        weighted = e * w.astype(jnp.bfloat16)                        # (TE, F) bf16
        mxu_dtype = jnp.bfloat16
    else:
        # f32 elementwise path (v5e-safe, and used for f32 inputs everywhere).
        ef32 = e.astype(jnp.float32)
        wrow = wrow_ref[...].astype(jnp.float32)                     # (1, F)
        logits = jnp.sum(ef32 * wrow, axis=-1, keepdims=True)        # (TE, 1)
        w = jnp.tanh(logits + bias)                                  # (TE, 1) f32
        mxu_dtype = jnp.bfloat16 if e.dtype == jnp.bfloat16 else jnp.float32
        weighted = (ef32 * w).astype(mxu_dtype)                      # (TE, F)

    # One-hot membership built in (G, TE) orientation so the segment sum is an
    # MXU-native matmul (contraction dim on lhs lanes / rhs sublanes).
    ids = ids_ref[...]                                               # (1, TE) int32
    onehot = (lax.broadcasted_iota(jnp.int32, (num_graphs, ids.shape[1]), 0)
              == ids).astype(mxu_dtype)                              # (G, TE)

    # Accumulate directly into the resident output block (f32 accumulation).
    out_ref[...] += jnp.dot(onehot, weighted,
                            preferred_element_type=jnp.float32)      # (G, F)


def _device_params():
    """Generation-aware VMEM / tiling parameters."""
    kind = ""
    try:
        kind = jax.devices()[0].device_kind.lower()
    except Exception:
        pass
    vmem_cap = None
    try:
        vmem_cap = int(pltpu.get_tpu_info().vmem_capacity_bytes)
    except Exception:
        vmem_cap = None
    if vmem_cap is None:
        # Conservative fallback: assume the smaller (v7x-class) VMEM if unknown.
        vmem_cap = (64 if "v7" in kind else 128) * 1024 * 1024

    vmem_limit = min(96 * 1024 * 1024, (vmem_cap * 3) // 4)   # 96 MiB v5e/v6e, 48 MiB v7x
    tile_budget = (vmem_limit * 3) // 4                        # headroom for pipeline/state
    is_old_gen = any(g in kind for g in ("v2", "v3", "v4", "v5"))
    align = 128 if (is_old_gen or not kind) else 256           # MXU K granularity
    elementwise_bf16 = bool(kind) and not is_old_gen           # bf16 VPU/EUP on v6e/v7x
    default_core_splits = 2 if "v7" in kind else 1             # v7x has 2 TensorCores
    return vmem_limit, tile_budget, align, elementwise_bf16, default_core_splits


def _pick_edge_tile(num_edges, num_feats, num_graphs, itemsize, mxu_itemsize,
                    requested, budget_bytes, align):
    """Largest edge tile whose double-buffered input streams *plus* in-kernel
    temporaries (one-hot, f32/bf16 weighted temporaries) and the resident (G, F)
    output block fit in the budget; multiple of `align`, capped near E itself."""
    stream_per_edge = 2 * (num_feats * itemsize + 4)           # 2 buffers x (feats + id)
    temp_per_edge = (num_graphs * mxu_itemsize                 # (G, TE) one-hot
                     + 2 * num_feats * 4                       # ef32 / weighted temporaries
                     + 8)                                      # logits / weight column
    per_edge = stream_per_edge + temp_per_edge
    fixed = 2 * num_graphs * num_feats * 4 + 64 * 1024         # resident (G, F) out + slack
    avail = max(budget_bytes - fixed, align * per_edge)
    cap = max(align, (avail // per_edge) // align * align)
    want = 8192 if requested is None else requested
    rounded_e = max(align, -(-num_edges // align) * align)
    tile = min(want, cap, rounded_e)
    return max(align, (tile // align) * align)


@functools.partial(jax.jit, static_argnames=("num_graphs", "edge_tile", "core_splits"))
def edge_weight_and_sum(edge_feats, graph_ids, weight_row, bias, *, num_graphs,
                        edge_tile=None, core_splits=None):
    """edge_feats: (E, F); graph_ids: (E,) int32 in [0, num_graphs);
    weight_row: (1, F); bias: (1, 1). Returns f32 (num_graphs, F).

    Note: graph ids >= num_graphs are silently dropped (matches
    jax.ops.segment_sum semantics). Padded edges have zero features and therefore
    contribute nothing regardless of their (padded) graph id.
    """
    E, F = edge_feats.shape
    G = num_graphs

    vmem_limit, tile_budget, align, elementwise_bf16, default_splits = _device_params()
    if core_splits is None:
        core_splits = default_splits

    mxu_itemsize = 2 if edge_feats.dtype == jnp.bfloat16 else 4
    tile = _pick_edge_tile(E, F, G, edge_feats.dtype.itemsize, mxu_itemsize,
                           edge_tile, tile_budget, align)
    chunk = tile * core_splits
    E_pad = -(-E // chunk) * chunk

    if E_pad != E:
        edge_feats = jnp.pad(edge_feats, ((0, E_pad - E), (0, 0)))
        graph_ids = jnp.pad(graph_ids, (0, E_pad - E))
    ids2d = graph_ids.astype(jnp.int32).reshape(1, E_pad)

    tiles_per_split = E_pad // chunk
    grid = (core_splits, tiles_per_split)

    kernel = functools.partial(_edge_weight_and_sum_kernel, num_graphs=G,
                               elementwise_bf16=elementwise_bf16)

    partials = pl.pallas_call(
        kernel,
        out_shape=jax.ShapeDtypeStruct((core_splits, G, F), jnp.float32),
        grid_spec=pltpu.PrefetchScalarGridSpec(
            num_scalar_prefetch=0,
            grid=grid,
            in_specs=[
                # int32 graph ids: edges on the lane axis, 4 bytes/edge of HBM traffic.
                pl.BlockSpec((1, tile), lambda c, k: (0, c * tiles_per_split + k)),
                # edge features tile.
                pl.BlockSpec((tile, F), lambda c, k: (c * tiles_per_split + k, 0)),
                # Linear weight as a (1, F) row, resident in VMEM.
                pl.BlockSpec((1, F), lambda c, k: (0, 0)),
                # Linear bias as an SMEM scalar.
                pl.BlockSpec(memory_space=pltpu.MemorySpace.SMEM),
            ],
            # One (G, F) partial per core-split; resident across the edge-tile axis,
            # used directly as the accumulator (no VMEM scratch needed).
            out_specs=pl.BlockSpec((None, G, F), lambda c, k: (c, 0, 0)),
        ),
        compiler_params=pltpu.CompilerParams(
            # leading split axis is parallel (megacore), edge-tile axis is a reduction.
            dimension_semantics=("parallel", "arbitrary"),
            vmem_limit_bytes=vmem_limit,
        ),
    )(ids2d, edge_feats, weight_row, bias)

    return partials[0] if core_splits == 1 else jnp.sum(partials, axis=0)


def _reference(edge_feats, graph_ids, weight_row, bias, num_graphs):
    w = jnp.tanh(edge_feats @ weight_row.T + bias[0, 0])           # (E, 1)
    return jax.ops.segment_sum(edge_feats * w, graph_ids, num_segments=num_graphs)


if __name__ == "__main__":
    # Small synthetic batched graph: G graphs, E total edges, in_feats features.
    in_feats = 32
    E = 64
    G = 2

    key = jax.random.PRNGKey(0)
    k_e, k_w, k_b = jax.random.split(key, 3)

    # Edge features (what DGL would store in g.edata['e']).
    edge_feats = jax.random.normal(k_e, (E, in_feats), dtype=jnp.float32)

    # Deterministic nn.Linear(in_feats, 1) init: U(-1/sqrt(F), 1/sqrt(F)).
    bound = 1.0 / (in_feats ** 0.5)
    weight_row = jax.random.uniform(k_w, (1, in_feats), jnp.float32, -bound, bound)
    bias = jax.random.uniform(k_b, (1, 1), jnp.float32, -bound, bound)

    # Graph membership per edge (first 40 edges -> graph 0, rest -> graph 1).
    # TODO(synk): DGL's batched-graph bookkeeping (g.local_scope etc.) has no Pallas
    # equivalent; membership is represented directly as int32 per-edge graph ids.
    graph_ids = jnp.concatenate([jnp.zeros((40,), jnp.int32),
                                 jnp.ones((E - 40,), jnp.int32)])

    out = edge_weight_and_sum(edge_feats, graph_ids, weight_row, bias, num_graphs=G)
    out = jax.block_until_ready(out)

    ref = _reference(edge_feats, graph_ids, weight_row, bias, G)
    assert out.shape == (G, in_feats)
    assert jnp.allclose(out, ref, atol=1e-4, rtol=1e-4), "mismatch vs pure-JAX reference"

    print("KERNEL_OK")
</pallas_src>

<mosaic_0001>
module attributes {stable_mosaic.version = 11 : i64} {
  func.func @_edge_weight_and_sum_kernel(%arg0: i32, %arg1: i32, %arg2: memref<1x256xi32, #tpu.memory_space<vmem>>, %arg3: memref<256x32xf32, #tpu.memory_space<vmem>>, %arg4: memref<1x32xf32, #tpu.memory_space<vmem>>, %arg5: memref<1x1xf32, #tpu.memory_space<smem>>, %arg6: memref<1x2x32xf32, #tpu.memory_space<vmem>>) attributes {dimension_semantics = [#tpu.dimension_semantics<parallel>, #tpu.dimension_semantics<arbitrary>], iteration_bounds = array<i64: 1, 1>, scalar_prefetch = 0 : i64, scratch_operands = 0 : i64, tpu.core_type = #tpu.core_type<tc>, window_params = [{transform_indices = @transform_0, window_bounds = array<i64: 1, 256>}, {transform_indices = @transform_1, window_bounds = array<i64: 256, 32>}, {pipeline_mode = #tpu.pipeline_mode<synchronous>, transform_indices = @transform_2, window_bounds = array<i64: 1, 32>}, {transform_indices = @transform_3, window_bounds = array<i64: 1, 1>}, {transform_indices = @transform_4, window_bounds = array<i64: 1, 2, 32>}]} {
    %c0_i32 = arith.constant 0 : i32
    %0 = arith.cmpi eq, %arg1, %c0_i32 : i32
    %1 = arith.extui %0 : i1 to i32
    %c0_i32_0 = arith.constant 0 : i32
    %2 = arith.cmpi ne, %1, %c0_i32_0 : i32
    scf.if %2 {
      %cst_15 = arith.constant 0.000000e+00 : f32
      %28 = vector.broadcast %cst_15 : f32 to vector<2x32xf32>
      %c0_16 = arith.constant 0 : index
      %c0_17 = arith.constant 0 : index
      %c0_18 = arith.constant 0 : index
      %29 = vector.load %arg6[%c0_16, %c0_17, %c0_18] : memref<1x2x32xf32, #tpu.memory_space<vmem>>, vector<1x2x32xf32>
      %30 = vector.shape_cast %29 : vector<1x2x32xf32> to vector<2x32xf32>
      %31 = vector.shape_cast %28 : vector<2x32xf32> to vector<1x2x32xf32>
      tpu.vector_store %arg6[%c0_16, %c0_17, %c0_18], %31 {strides = array<i32>} : memref<1x2x32xf32, #tpu.memory_space<vmem>>, vector<1x2x32xf32>,
    } else {
    }
    %c0 = arith.constant 0 : index
    %c0_1 = arith.constant 0 : index
    %3 = vector.load %arg3[%c0, %c0_1] : memref<256x32xf32, #tpu.memory_space<vmem>>, vector<256x32xf32>
    %c0_2 = arith.constant 0 : index
    %c0_3 = arith.constant 0 : index
    %4 = memref.load %arg5[%c0_2, %c0_3] : memref<1x1xf32, #tpu.memory_space<smem>>
    %c0_4 = arith.constant 0 : index
    %c0_5 = arith.constant 0 : index
    %5 = vector.load %arg4[%c0_4, %c0_5] : memref<1x32xf32, #tpu.memory_space<vmem>>, vector<1x32xf32>
    %6 = vector.broadcast %5 : vector<1x32xf32> to vector<256x32xf32>
    %7 = arith.mulf %3, %6 : vector<256x32xf32>
    %cst = arith.constant dense<0.000000e+00> : vector<256xf32>
    %8 = vector.multi_reduction <add>, %7, %cst [1] : vector<256x32xf32> to vector<256xf32>
    %9 = vector.shape_cast %8 : vector<256xf32> to vector<256x1xf32>
    %10 = vector.broadcast %4 : f32 to vector<256x1xf32>
    %11 = arith.addf %9, %10 : vector<256x1xf32>
    %12 = math.tanh %11 : vector<256x1xf32>
    %13 = vector.broadcast %12 : vector<256x1xf32> to vector<256x32xf32>
    %14 = arith.mulf %3, %13 : vector<256x32xf32>
    %c0_6 = arith.constant 0 : index
    %c0_7 = arith.constant 0 : index
    %15 = vector.load %arg2[%c0_6, %c0_7] : memref<1x256xi32, #tpu.memory_space<vmem>>, vector<1x256xi32>
    %16 = tpu.iota {dimensions = array<i32: 0>} : vector<2x256xi32>
    %17 = vector.broadcast %15 : vector<1x256xi32> to vector<2x256xi32>
    %18 = arith.cmpi eq, %16, %17 : vector<2x256xi32>
    %19 = arith.extui %18 : vector<2x256xi1> to vector<2x256xi32>
    %20 = arith.sitofp %19 : vector<2x256xi32> to vector<2x256xf32>
    %c0_8 = arith.constant 0 : index
    %c0_9 = arith.constant 0 : index
    %c0_10 = arith.constant 0 : index
    %21 = vector.load %arg6[%c0_8, %c0_9, %c0_10] : memref<1x2x32xf32, #tpu.memory_space<vmem>>, vector<1x2x32xf32>
    %22 = vector.shape_cast %21 : vector<1x2x32xf32> to vector<2x32xf32>
    %cst_11 = arith.constant dense<0.000000e+00> : vector<2x32xf32>
    %23 = tpu.matmul %20, %14, %cst_11 {dimension_numbers = #tpu.dot_dimension_numbers<[1], [0], [0], [1], [0, 0, 1, 1], [], []>} : vector<2x256xf32>, vector<256x32xf32>, vector<2x32xf32> -> vector<2x32xf32>
    %24 = arith.addf %22, %23 : vector<2x32xf32>
    %c0_12 = arith.constant 0 : index
    %c0_13 = arith.constant 0 : index
    %c0_14 = arith.constant 0 : index
    %25 = vector.load %arg6[%c0_12, %c0_13, %c0_14] : memref<1x2x32xf32, #tpu.memory_space<vmem>>, vector<1x2x32xf32>
    %26 = vector.shape_cast %25 : vector<1x2x32xf32> to vector<2x32xf32>
    %27 = vector.shape_cast %24 : vector<2x32xf32> to vector<1x2x32xf32>
    tpu.vector_store %arg6[%c0_12, %c0_13, %c0_14], %27 {strides = array<i32>} : memref<1x2x32xf32, #tpu.memory_space<vmem>>, vector<1x2x32xf32>,
    return
  }
  func.func @transform_0(%arg0: i32, %arg1: i32) -> (i32, i32) {
    %c1_i32 = arith.constant 1 : i32
    %0 = arith.muli %arg0, %c1_i32 : i32
    %1 = arith.addi %0, %arg1 : i32
    %c0_i32 = arith.constant 0 : i32
    %c0_i32_0 = arith.constant 0 : i32
    return %c0_i32, %1 : i32, i32
  }
  func.func @transform_1(%arg0: i32, %arg1: i32) -> (i32, i32) {
    %c1_i32 = arith.constant 1 : i32
    %0 = arith.muli %arg0, %c1_i32 : i32
    %1 = arith.addi %0, %arg1 : i32
    %c0_i32 = arith.constant 0 : i32
    %c0_i32_0 = arith.constant 0 : i32
    return %1, %c0_i32 : i32, i32
  }
  func.func @transform_2(%arg0: i32, %arg1: i32) -> (i32, i32) {
    %c0_i32 = arith.constant 0 : i32
    %c0_i32_0 = arith.constant 0 : i32
    %c0_i32_1 = arith.constant 0 : i32
    return %c0_i32, %c0_i32_0 : i32, i32
  }
  func.func @transform_3(%arg0: i32, %arg1: i32) -> (i32, i32) {
    %c0_i32 = arith.constant 0 : i32
    %c0_i32_0 = arith.constant 0 : i32
    %c0_i32_1 = arith.constant 0 : i32
    return %c0_i32, %c0_i32_0 : i32, i32
  }
  func.func @transform_4(%arg0: i32, %arg1: i32) -> (i32, i32, i32) {
    %c0_i32 = arith.constant 0 : i32
    %c0_i32_0 = arith.constant 0 : i32
    %c0_i32_1 = arith.constant 0 : i32
    return %arg0, %c0_i32, %c0_i32_0 : i32, i32, i32
  }
}

</mosaic_0001>

<llo_original>
// kernel: edge_weight_and_sum.1
$region0: #{edge_weight_and_sum.1}
  #allocation0 [shape = 'u32[]', space=smem, size = 0x4, offset = 0x4, fixed_abs, tag = 'smem constant byte address 0x4 - core index']
  #allocation1 [shape = 'u32[144,128]{1,0:T(1,128)}', space=vmem, size = 0x12000, scoped, tag = 'internal scratch']
  #allocation2 [shape = 'f32[1,1]{1,0:T(1,128)S(6)}', space=smem, size = 0x200, scoped, tag = 'scoped memory for edge_weight_and_sum.1']
  %s0 = inlined_call_operand.hbm [shape: s32[1,256], index: 0, kind: input, shape index: {}]
  %s1 = inlined_call_operand.hbm [shape: f32[256,32], index: 1, kind: input, shape index: {}]
  %s2 = inlined_call_operand.hbm [shape: f32[1,32], index: 2, kind: input, shape index: {}]
  %s3 = inlined_call_operand.<no memory space> [shape: f32[1,1], index: 3, kind: input, shape index: {}]
  %s4 = inlined_call_operand.hbm [shape: f32[1,2,32], index: 4, kind: output, shape index: {}]
  %s5 = sld [smem:[#allocation0]]
  $region42: #{edge_weight_and_sum.1} parent=0
    _
  %s7 = ssub.s32 1, %s5
  %s8 = scalar_select 0, %s7, %s5
  %9 = sst [smem:[#allocation2]] %s3
  $region1: #{edge_weight_and_sum.1} parent=0
    #allocation3 [shape = 'u8[1024]{0}', space=vmem, size = 0x400, scoped, tag = 'input window, operand 0, single buffered']
    #allocation4 [shape = 's32[1]{0}', space=sflag, size = 0x4, scoped, tag = 'scoped memory for edge_weight_and_sum.1']
    #allocation5 [shape = 's32[1]{0}', space=sflag, size = 0x4, scoped, tag = 'scoped memory for edge_weight_and_sum.1']
    #allocation6 [shape = 'u8[131072]{0}', space=vmem, size = 0x20000, scoped, tag = 'input window, operand 1, single buffered']
    #allocation7 [shape = 's32[1]{0}', space=sflag, size = 0x4, scoped, tag = 'scoped memory for edge_weight_and_sum.1']
    #allocation8 [shape = 'u8[512]{0}', space=vmem, size = 0x400, scoped, tag = 'input window, operand 2, single buffered']
    #allocation9 [shape = 'u8[1024]{0}', space=vmem, size = 0x400, scoped, tag = 'output window, operand 0, single buffered']
    %10 = vsyncpa [#allocation4], 0
    %11 = vsyncpa [#allocation7], 0
    %12 = vsyncpa [#allocation5], 0
    // Predicated region
    $region2: #{edge_weight_and_sum.1} parent=1 // pred_check
      _
    $region3: #{edge_weight_and_sum.1} parent=1 // pred_check_branch
      %14 = sbr.rel (0) target = $region5
    $region4: #{edge_weight_and_sum.1} parent=1 // pred_region
      %s15 = sadd.s32 0, 0
      %s16 = smul.u32 2, %s15
      %s18 = ssub.s32 32, 32
      %19 = vsyncadd [#allocation4], %s18
      %s20 = smul.addr %s16, 16
      %s21 = scalar_lea.hbm %s0, %s20
      %s23 = sshll.u32 [#allocation3], 4
      %s24 = int_to_ptr.vmem [resolvable:$true] %s23
      %26 = dma.hbm_to_vmem [thread:$0]  %s21, 32, %s24, [#allocation4]
    $region5: #{edge_weight_and_sum.1} parent=1 // pred_fallthru
      _
    // Predicated region
    $region6: #{edge_weight_and_sum.1} parent=1 // pred_check
      _
    $region7: #{edge_weight_and_sum.1} parent=1 // pred_check_branch
      %28 = sbr.rel (0) target = $region9
    $region8: #{edge_weight_and_sum.1} parent=1 // pred_region
      %s29 = sadd.s32 0, 0
      %s30 = smul.u32 32, %s29
      %s32 = ssub.s32 4096, 4096
      %33 = vsyncadd [#allocation7], %s32
      %s34 = smul.addr %s30, 128
      %s35 = scalar_lea.hbm %s1, %s34
      %s36 = sshll.u32 [#allocation6], 4
      %s37 = int_to_ptr.vmem [resolvable:$true] %s36
      %42 = dma.hbm_to_vmem [thread:$0]  %s35, 4096, %s37, [#allocation7], 128, 128, 8
    $region9: #{edge_weight_and_sum.1} parent=1 // pred_fallthru
      _
    // Predicated region
    $region10: #{edge_weight_and_sum.1} parent=1 // pred_check
      _
    $region11: #{edge_weight_and_sum.1} parent=1 // pred_check_branch
      %44 = sbr.rel (0) target = $region13
    $region12: #{edge_weight_and_sum.1} parent=1 // pred_region
      %s46 = ssub.s32 16, 16
      %47 = vsyncadd [#allocation7], %s46
      %s49 = sshll.u32 [#allocation8], 4
      %s50 = int_to_ptr.vmem [resolvable:$true] %s49
      %52 = dma.hbm_to_vmem [thread:$0]  %s2, 16, %s50, [#allocation7]
    $region13: #{edge_weight_and_sum.1} parent=1 // pred_fallthru
      _
    // Predicated region
    $region14: #{edge_weight_and_sum.1} parent=1 // pred_check
      _
    $region15: #{edge_weight_and_sum.1} parent=1 // pred_check_branch
      %54 = sbr.rel (0) target = $region17
    $region16: #{edge_weight_and_sum.1} parent=1 // pred_region
      _
    $region17: #{edge_weight_and_sum.1} parent=1 // pred_fallthru
      _
    // Predicated region
    $region18: #{edge_weight_and_sum.1} parent=1 // pred_check
      _
    $region19: #{edge_weight_and_sum.1} parent=1 // pred_check_branch
      %56 = sbr.rel (0) target = $region21
    $region20: #{edge_weight_and_sum.1} parent=1 // pred_region
      %57 = dma.done [#allocation4], 32
    $region21: #{edge_weight_and_sum.1} parent=1 // pred_fallthru
      _
    // Predicated region
    $region22: #{edge_weight_and_sum.1} parent=1 // pred_check
      _
    $region23: #{edge_weight_and_sum.1} parent=1 // pred_check_branch
      %59 = sbr.rel (0) target = $region25
    $region24: #{edge_weight_and_sum.1} parent=1 // pred_region
      %60 = dma.done [#allocation7], 4096
    $region25: #{edge_weight_and_sum.1} parent=1 // pred_fallthru
      _
    // Predicated region
    $region26: #{edge_weight_and_sum.1} parent=1 // pred_check
      _
    $region27: #{edge_weight_and_sum.1} parent=1 // pred_check_branch
      %62 = sbr.rel (0) target = $region29
    $region28: #{edge_weight_and_sum.1} parent=1 // pred_region
      %63 = dma.done [#allocation7], 16
    $region29: #{edge_weight_and_sum.1} parent=1 // pred_fallthru
      _
    %s64 = sadd.s32 0, 0
    %s65 = smul.u32 2, %s64
    %s66 = sadd.s32 0, 0
    %s67 = smul.u32 32, %s66
    %p68 = scmp.eq.s32.totalorder 0, 0
    // Predicated region
    $region30: #{edge_weight_and_sum.1} parent=1 // pred_check
      %p69 = pneg %p68
    $region31: #{edge_weight_and_sum.1} parent=1 // pred_check_branch
      %71 = sbr.rel (%p69) target = $region33
    $region32: #{edge_weight_and_sum.1} parent=1 // pred_region
      %vm72 = vcmask 254976
      %73 = vst.msk [vmem:[#allocation9] sm:$0x3] %vm72, 0.0
    $region33: #{edge_weight_and_sum.1} parent=1 // pred_fallthru
      _
    %v74 = vld [vmem:[#allocation6] sm:$0xff]
    %v75 = vld [vmem:[#allocation6 + $0x8] sm:$0xff]
    %v76 = vld [vmem:[#allocation6 + $0x10] sm:$0xff]
    %v77 = vld [vmem:[#allocation6 + $0x18] sm:$0xff]
    %v78 = vld [vmem:[#allocation6 + $0x20] sm:$0xff]
    %v79 = vld [vmem:[#allocation6 + $0x28] sm:$0xff]
    %v80 = vld [vmem:[#allocation6 + $0x30] sm:$0xff]
    %v81 = vld [vmem:[#allocation6 + $0x38] sm:$0xff]
    %v82 = vld [vmem:[#allocation6 + $0x40] sm:$0xff]
    %v83 = vld [vmem:[#allocation6 + $0x48] sm:$0xff]
    %v84 = vld [vmem:[#allocation6 + $0x50] sm:$0xff]
    %v85 = vld [vmem:[#allocation6 + $0x58] sm:$0xff]
    %v86 = vld [vmem:[#allocation6 + $0x60] sm:$0xff]
    %v87 = vld [vmem:[#allocation6 + $0x68] sm:$0xff]
    %v88 = vld [vmem:[#allocation6 + $0x70] sm:$0xff]
    %v89 = vld [vmem:[#allocation6 + $0x78] sm:$0xff]
    %v90 = vld [vmem:[#allocation6 + $0x80] sm:$0xff]
    %v91 = vld [vmem:[#allocation6 + $0x88] sm:$0xff]
    %v92 = vld [vmem:[#allocation6 + $0x90] sm:$0xff]
    %v93 = vld [vmem:[#allocation6 + $0x98] sm:$0xff]
    %v94 = vld [vmem:[#allocation6 + $0xa0] sm:$0xff]
    %v95 = vld [vmem:[#allocation6 + $0xa8] sm:$0xff]
    %v96 = vld [vmem:[#allocation6 + $0xb0] sm:$0xff]
    %v97 = vld [vmem:[#allocation6 + $0xb8] sm:$0xff]
    %v98 = vld [vmem:[#allocation6 + $0xc0] sm:$0xff]
    %v99 = vld [vmem:[#allocation6 + $0xc8] sm:$0xff]
    %v100 = vld [vmem:[#allocation6 + $0xd0] sm:$0xff]
    %v101 = vld [vmem:[#allocation6 + $0xd8] sm:$0xff]
    %v102 = vld [vmem:[#allocation6 + $0xe0] sm:$0xff]
    %v103 = vld [vmem:[#allocation6 + $0xe8] sm:$0xff]
    %v104 = vld [vmem:[#allocation6 + $0xf0] sm:$0xff]
    %v105 = vld [vmem:[#allocation6 + $0xf8] sm:$0xff]
    %s106 = sld [smem:[#allocation2]]
    %v107 = vld [vmem:[#allocation8] sm:$0x1]
    %v109 = vlaneseq
    %v110 = vshrl.u32 %v109, 7
    %v111 = vsub.s32 0, %v110
    %v112 = vrot.slane %v107, %v111
    %v114 = vmul.f32 %v74, %v112
    %v115 = vmul.f32 %v75, %v112
    %v116 = vmul.f32 %v76, %v112
    %v117 = vmul.f32 %v77, %v112
    %v118 = vmul.f32 %v78, %v112
    %v119 = vmul.f32 %v79, %v112
    %v120 = vmul.f32 %v80, %v112
    %v121 = vmul.f32 %v81, %v112
    %v122 = vmul.f32 %v82, %v112
    %v123 = vmul.f32 %v83, %v112
    %v124 = vmul.f32 %v84, %v112
    %v125 = vmul.f32 %v85, %v112
    %v126 = vmul.f32 %v86, %v112
    %v127 = vmul.f32 %v87, %v112
    %v128 = vmul.f32 %v88, %v112
    %v129 = vmul.f32 %v89, %v112
    %v130 = vmul.f32 %v90, %v112
    %v131 = vmul.f32 %v91, %v112
    %v132 = vmul.f32 %v92, %v112
    %v133 = vmul.f32 %v93, %v112
    %v134 = vmul.f32 %v94, %v112
    %v135 = vmul.f32 %v95, %v112
    %v136 = vmul.f32 %v96, %v112
    %v137 = vmul.f32 %v97, %v112
    %v138 = vmul.f32 %v98, %v112
    %v139 = vmul.f32 %v99, %v112
    %v140 = vmul.f32 %v100, %v112
    %v141 = vmul.f32 %v101, %v112
    %v142 = vmul.f32 %v102, %v112
    %v143 = vmul.f32 %v103, %v112
    %v144 = vmul.f32 %v104, %v112
    %v145 = vmul.f32 %v105, %v112
    %vm146 = vcmask 261120
    %v147 = vsel %vm146, %v114, 0.0
    %148 = vadd.xlane.f32.xlu0 %v147
    %v149 = vpop.xlane.xlu0 %148
    %v150 = vsel %vm146, %v115, 0.0
    %151 = vadd.xlane.f32.xlu0 %v150
    %v152 = vpop.xlane.xlu0 %151
    %v153 = vsel %vm146, %v116, 0.0
    %154 = vadd.xlane.f32.xlu0 %v153
    %v155 = vpop.xlane.xlu0 %154
    %v156 = vsel %vm146, %v117, 0.0
    %157 = vadd.xlane.f32.xlu0 %v156
    %v158 = vpop.xlane.xlu0 %157
    %v159 = vsel %vm146, %v118, 0.0
    %160 = vadd.xlane.f32.xlu0 %v159
    %v161 = vpop.xlane.xlu0 %160
    %v162 = vsel %vm146, %v119, 0.0
    %163 = vadd.xlane.f32.xlu0 %v162
    %v164 = vpop.xlane.xlu0 %163
    %v165 = vsel %vm146, %v120, 0.0
    %166 = vadd.xlane.f32.xlu0 %v165
    %v167 = vpop.xlane.xlu0 %166
    %v168 = vsel %vm146, %v121, 0.0
    %169 = vadd.xlane.f32.xlu0 %v168
    %v170 = vpop.xlane.xlu0 %169
    %v171 = vsel %vm146, %v122, 0.0
    %172 = vadd.xlane.f32.xlu0 %v171
    %v173 = vpop.xlane.xlu0 %172
    %v174 = vsel %vm146, %v123, 0.0
    %175 = vadd.xlane.f32.xlu0 %v174
    %v176 = vpop.xlane.xlu0 %175
    %v177 = vsel %vm146, %v124, 0.0
    %178 = vadd.xlane.f32.xlu0 %v177
    %v179 = vpop.xlane.xlu0 %178
    %v180 = vsel %vm146, %v125, 0.0
    %181 = vadd.xlane.f32.xlu0 %v180
    %v182 = vpop.xlane.xlu0 %181
    %v183 = vsel %vm146, %v126, 0.0
    %184 = vadd.xlane.f32.xlu0 %v183
    %v185 = vpop.xlane.xlu0 %184
    %v186 = vsel %vm146, %v127, 0.0
    %187 = vadd.xlane.f32.xlu0 %v186
    %v188 = vpop.xlane.xlu0 %187
    %v189 = vsel %vm146, %v128, 0.0
    %190 = vadd.xlane.f32.xlu0 %v189
    %v191 = vpop.xlane.xlu0 %190
    %v192 = vsel %vm146, %v129, 0.0
    %193 = vadd.xlane.f32.xlu0 %v192
    %v194 = vpop.xlane.xlu0 %193
    %v195 = vsel %vm146, %v130, 0.0
    %196 = vadd.xlane.f32.xlu0 %v195
    %v197 = vpop.xlane.xlu0 %196
    %v198 = vsel %vm146, %v131, 0.0
    %199 = vadd.xlane.f32.xlu0 %v198
    %v200 = vpop.xlane.xlu0 %199
    %v201 = vsel %vm146, %v132, 0.0
    %202 = vadd.xlane.f32.xlu0 %v201
    %v203 = vpop.xlane.xlu0 %202
    %v204 = vsel %vm146, %v133, 0.0
    %205 = vadd.xlane.f32.xlu0 %v204
    %v206 = vpop.xlane.xlu0 %205
    %v207 = vsel %vm146, %v134, 0.0
    %208 = vadd.xlane.f32.xlu0 %v207
    %v209 = vpop.xlane.xlu0 %208
    %v210 = vsel %vm146, %v135, 0.0
    %211 = vadd.xlane.f32.xlu0 %v210
    %v212 = vpop.xlane.xlu0 %211
    %v213 = vsel %vm146, %v136, 0.0
    %214 = vadd.xlane.f32.xlu0 %v213
    %v215 = vpop.xlane.xlu0 %214
    %v216 = vsel %vm146, %v137, 0.0
    %217 = vadd.xlane.f32.xlu0 %v216
    %v218 = vpop.xlane.xlu0 %217
    %v219 = vsel %vm146, %v138, 0.0
    %220 = vadd.xlane.f32.xlu0 %v219
    %v221 = vpop.xlane.xlu0 %220
    %v222 = vsel %vm146, %v139, 0.0
    %223 = vadd.xlane.f32.xlu0 %v222
    %v224 = vpop.xlane.xlu0 %223
    %v225 = vsel %vm146, %v140, 0.0
    %226 = vadd.xlane.f32.xlu0 %v225
    %v227 = vpop.xlane.xlu0 %226
    %v228 = vsel %vm146, %v141, 0.0
    %229 = vadd.xlane.f32.xlu0 %v228
    %v230 = vpop.xlane.xlu0 %229
    %v231 = vsel %vm146, %v142, 0.0
    %232 = vadd.xlane.f32.xlu0 %v231
    %v233 = vpop.xlane.xlu0 %232
    %v234 = vsel %vm146, %v143, 0.0
    %235 = vadd.xlane.f32.xlu0 %v234
    %v236 = vpop.xlane.xlu0 %235
    %v237 = vsel %vm146, %v144, 0.0
    %238 = vadd.xlane.f32.xlu0 %v237
    %v239 = vpop.xlane.xlu0 %238
    %v240 = vsel %vm146, %v145, 0.0
    %241 = vadd.xlane.f32.xlu0 %v240
    %v242 = vpop.xlane.xlu0 %241
    %v243 = vstv %s106
    %v244 = vadd.f32 %v149, %v243
    %v245 = vadd.f32 %v152, %v243
    %v246 = vadd.f32 %v155, %v243
    %v247 = vadd.f32 %v158, %v243
    %v248 = vadd.f32 %v161, %v243
    %v249 = vadd.f32 %v164, %v243
    %v250 = vadd.f32 %v167, %v243
    %v251 = vadd.f32 %v170, %v243
    %v252 = vadd.f32 %v173, %v243
    %v253 = vadd.f32 %v176, %v243
    %v254 = vadd.f32 %v179, %v243
    %v255 = vadd.f32 %v182, %v243
    %v256 = vadd.f32 %v185, %v243
    %v257 = vadd.f32 %v188, %v243
    %v258 = vadd.f32 %v191, %v243
    %v259 = vadd.f32 %v194, %v243
    %v260 = vadd.f32 %v197, %v243
    %v261 = vadd.f32 %v200, %v243
    %v262 = vadd.f32 %v203, %v243
    %v263 = vadd.f32 %v206, %v243
    %v264 = vadd.f32 %v209, %v243
    %v265 = vadd.f32 %v212, %v243
    %v266 = vadd.f32 %v215, %v243
    %v267 = vadd.f32 %v218, %v243
    %v268 = vadd.f32 %v221, %v243
    %v269 = vadd.f32 %v224, %v243
    %v270 = vadd.f32 %v227, %v243
    %v271 = vadd.f32 %v230, %v243
    %v272 = vadd.f32 %v233, %v243
    %v273 = vadd.f32 %v236, %v243
    %v274 = vadd.f32 %v239, %v243
    %v275 = vadd.f32 %v242, %v243
    %v276 = vtanh.pop %v244
    %v277 = vtanh.pop %v245
    %v278 = vtanh.pop %v246
    %v279 = vtanh.pop %v247
    %v280 = vtanh.pop %v248
    %v281 = vtanh.pop %v249
    %v282 = vtanh.pop %v250
    %v283 = vtanh.pop %v251
    %v284 = vtanh.pop %v252
    %v285 = vtanh.pop %v253
    %v286 = vtanh.pop %v254
    %v287 = vtanh.pop %v255
    %v288 = vtanh.pop %v256
    %v289 = vtanh.pop %v257
    %v290 = vtanh.pop %v258
    %v291 = vtanh.pop %v259
    %v292 = vtanh.pop %v260
    %v293 = vtanh.pop %v261
    %v294 = vtanh.pop %v262
    %v295 = vtanh.pop %v263
    %v296 = vtanh.pop %v264
    %v297 = vtanh.pop %v265
    %v298 = vtanh.pop %v266
    %v299 = vtanh.pop %v267
    %v300 = vtanh.pop %v268
    %v301 = vtanh.pop %v269
    %v302 = vtanh.pop %v270
    %v303 = vtanh.pop %v271
    %v304 = vtanh.pop %v272
    %v305 = vtanh.pop %v273
    %v306 = vtanh.pop %v274
    %v307 = vtanh.pop %v275
    %v308 = vmul.f32 %v74, %v276
    %v309 = vmul.f32 %v75, %v277
    %v310 = vmul.f32 %v76, %v278
    %v311 = vmul.f32 %v77, %v279
    %v312 = vmul.f32 %v78, %v280
    %v313 = vmul.f32 %v79, %v281
    %v314 = vmul.f32 %v80, %v282
    %v315 = vmul.f32 %v81, %v283
    %v316 = vmul.f32 %v82, %v284
    %v317 = vmul.f32 %v83, %v285
    %v318 = vmul.f32 %v84, %v286
    %v319 = vmul.f32 %v85, %v287
    %v320 = vmul.f32 %v86, %v288
    %v321 = vmul.f32 %v87, %v289
    %v322 = vmul.f32 %v88, %v290
    %v323 = vmul.f32 %v89, %v291
    %v324 = vmul.f32 %v90, %v292
    %v325 = vmul.f32 %v91, %v293
    %v326 = vmul.f32 %v92, %v294
    %v327 = vmul.f32 %v93, %v295
    %v328 = vmul.f32 %v94, %v296
    %v329 = vmul.f32 %v95, %v297
    %v330 = vmul.f32 %v96, %v298
    %v331 = vmul.f32 %v97, %v299
    %v332 = vmul.f32 %v98, %v300
    %v333 = vmul.f32 %v99, %v301
    %v334 = vmul.f32 %v100, %v302
    %v335 = vmul.f32 %v101, %v303
    %v336 = vmul.f32 %v102, %v304
    %v337 = vmul.f32 %v103, %v305
    %v338 = vmul.f32 %v104, %v306
    %v339 = vmul.f32 %v105, %v307
    %v340 = vld [vmem:[#allocation3] sm:$0x3]
    %v341 = vlaneseq
    %v342 = vshrl.u32 %v341, 7
    %v343 = vlaneseq
    %v344 = vshrl.u32 %v343, 7
    %v345 = vsub.s32 0, %v344
    %v346 = vrot.slane %v340, %v345
    %v347 = vlaneseq
    %v348 = vshrl.u32 %v347, 7
    %v349 = vsub.s32 1, %v348
    %v350 = vrot.slane %v340, %v349
    %vm351 = vcmp.eq.s32.totalorder %v342, %v346
    %vm352 = vcmp.eq.s32.totalorder %v342, %v350
    %v353 = vsel %vm351, 1, 0
    %v354 = vsel %vm352, 1, 0
    %v355 = vcvt.s32.f32 %v353
    %v356 = vcvt.s32.f32 %v354
    %v357 = vld [vmem:[#allocation9] sm:$0x3]
    %358 = vmatprep.subr.mxu0 0.0
    %359 = vmatpush1.msra.mxu0 %v308
    %360 = vmatprep.subr.mxu0 0.0
    %361 = vmatpush1.msra.mxu0 %v309
    %362 = vmatprep.subr.mxu0 0.0
    %363 = vmatpush1.msra.mxu0 %v310
    %364 = vmatprep.subr.mxu0 0.0
    %365 = vmatpush1.msra.mxu0 %v311
    %366 = vmatprep.subr.mxu0 0.0
    %367 = vmatpush1.msra.mxu0 %v312
    %368 = vmatprep.subr.mxu0 0.0
    %369 = vmatpush1.msra.mxu0 %v313
    %370 = vmatprep.subr.mxu0 0.0
    %371 = vmatpush1.msra.mxu0 %v314
    %372 = vmatprep.subr.mxu0 0.0
    %373 = vmatpush1.msra.mxu0 %v315
    %374 = vmatprep.subr.mxu0 0.0
    %375 = vmatpush1.msra.mxu0 %v316
    %376 = vmatprep.subr.mxu0 0.0
    %377 = vmatpush1.msra.mxu0 %v317
    %378 = vmatprep.subr.mxu0 0.0
    %379 = vmatpush1.msra.mxu0 %v318
    %380 = vmatprep.subr.mxu0 0.0
    %381 = vmatpush1.msra.mxu0 %v319
    %382 = vmatprep.subr.mxu0 0.0
    %383 = vmatpush1.msra.mxu0 %v320
    %384 = vmatprep.subr.mxu0 0.0
    %385 = vmatpush1.msra.mxu0 %v321
    %386 = vmatprep.subr.mxu0 0.0
    %387 = vmatpush1.msra.mxu0 %v322
    %388 = vmatprep.subr.mxu0 0.0
    %389 = vmatpush1.msra.mxu0 %v323
    %390 = vmatprep.subr.mxu0 0.0
    %391 = vmatpush1.msra.mxu0 %v324
    %392 = vmatprep.subr.mxu0 0.0
    %393 = vmatpush1.msra.mxu0 %v325
    %394 = vmatprep.subr.mxu0 0.0
    %395 = vmatpush1.msra.mxu0 %v326
    %396 = vmatprep.subr.mxu0 0.0
    %397 = vmatpush1.msra.mxu0 %v327
    %398 = vmatprep.subr.mxu0 0.0
    %399 = vmatpush1.msra.mxu0 %v328
    %400 = vmatprep.subr.mxu0 0.0
    %401 = vmatpush1.msra.mxu0 %v329
    %402 = vmatprep.subr.mxu0 0.0
    %403 = vmatpush1.msra.mxu0 %v330
    %404 = vmatprep.subr.mxu0 0.0
    %405 = vmatpush1.msra.mxu0 %v331
    %406 = vmatprep.subr.mxu0 0.0
    %407 = vmatpush1.msra.mxu0 %v332
    %408 = vmatprep.subr.mxu0 0.0
    %409 = vmatpush1.msra.mxu0 %v333
    %410 = vmatprep.subr.mxu0 0.0
    %411 = vmatpush1.msra.mxu0 %v334
    %412 = vmatprep.subr.mxu0 0.0
    %413 = vmatpush1.msra.mxu0 %v335
    %414 = vmatprep.subr.mxu0 0.0
    %415 = vmatpush1.msra.mxu0 %v336
    %416 = vmatprep.subr.mxu0 0.0
    %417 = vmatpush1.msra.mxu0 %v337
    %418 = vmatprep.subr.mxu0 0.0
    %419 = vmatpush1.msra.mxu0 %v338
    %420 = vmatprep.subr.mxu0 0.0
    %421 = vmatpush1.msra.mxu0 %v339
    %422 = vmatprep.mubr.f32.mxu0 %v356
    %423 = vmatmul.mubr.f32.gmra.mrb[0].mxu0 %v355
    %v424 = vpop.f32.mrb[0].mxu0
    %v425 = vadd.f32 0.0, %v424
    %v426 = vpop.f32.mrb[0].mxu0
    %427 = vdwg.mxu0
    %v428 = vadd.f32 %v357, %v425
    %vm429 = vcmask 254976
    %430 = vst.msk [vmem:[#allocation9] sm:$0x3] %vm429, %v428
    // Predicated region
    $region34: #{edge_weight_and_sum.1} parent=1 // pred_check
      _
    $region35: #{edge_weight_and_sum.1} parent=1 // pred_check_branch
      %432 = sbr.rel (0) target = $region37
    $region36: #{edge_weight_and_sum.1} parent=1 // pred_region
      %s434 = ssub.s32 32, 32
      %435 = vsyncadd [#allocation5], %s434
      %s437 = sshll.u32 [#allocation9], 4
      %s438 = int_to_ptr.vmem [resolvable:$true] %s437
      %440 = dma.vmem_to_hbm [thread:$0]  %s438, 32, %s4, [#allocation5]
    $region37: #{edge_weight_and_sum.1} parent=1 // pred_fallthru
      _
    // Predicated region
    $region38: #{edge_weight_and_sum.1} parent=1 // pred_check
      _
    $region39: #{edge_weight_and_sum.1} parent=1 // pred_check_branch
      %442 = sbr.rel (0) target = $region41
    $region40: #{edge_weight_and_sum.1} parent=1 // pred_region
      %443 = dma.done [#allocation5], 32
    $region41: #{edge_weight_and_sum.1} parent=1 // pred_fallthru
      _
    %444 = vsyncpa [#allocation4], 1
    %445 = vsyncpa [#allocation7], 1
    %446 = vsyncpa [#allocation5], 1

</llo_original>
